<compile_context>
chip_gen: v7x
topology: tpu7x:2x2x1
jax: 0.10.0
libtpu: 0.0.40
codegen_flags: <defaults>
</compile_context>

<pallas_src>
import functools

import jax
import jax.numpy as jnp
from jax.experimental import pallas as pl
from jax.experimental.pallas import tpu as pltpu


def ffn_kernel(x_ref, w1_ref, b1_ref, w2_ref, b2_ref, o_ref, *scratch,
               compute_dtype, n_h):
    # x_ref : (tm, Dp)  activation tile (input dtype; cast per-tile)
    # w1_ref: (Dp, th)  W1^T tile (compute dtype)
    # b1_ref: (1, th)   b1 slice (f32)
    # w2_ref: (th, Dp)  W2^T tile (compute dtype)
    # b2_ref: (1, Dp)   b2 (f32)
    # o_ref : (tm, Dp)  output tile (input dtype)
    # scratch: (acc,)   f32 accumulator, only allocated when n_h > 1
    x = x_ref[...].astype(compute_dtype)
    h = jnp.dot(x, w1_ref[...], preferred_element_type=jnp.float32)
    h = h + b1_ref[...]                                   # f32 bias add
    # nn.Dropout -> identity (eval / inference mode).
    y = jnp.dot(h.astype(compute_dtype), w2_ref[...],
                preferred_element_type=jnp.float32)        # (tm, Dp) f32

    if n_h == 1:
        o_ref[...] = (y + b2_ref[...]).astype(o_ref.dtype)
    else:
        acc_ref = scratch[0]
        j = pl.program_id(1)

        @pl.when(j == 0)
        def _():
            acc_ref[...] = jnp.zeros_like(acc_ref)

        acc_ref[...] += y

        @pl.when(j == n_h - 1)
        def _():
            o_ref[...] = (acc_ref[...] + b2_ref[...]).astype(o_ref.dtype)


def _round_up(n, m):
    return ((n + m - 1) // m) * m


def _choose_tiles(M, d_model, hidden, xbytes, wbytes, obytes,
                  tm_pref=256, th_force=None, budget_bytes=40 << 20):
    """Pick (row tile, padded d_model, hidden tile) under a VMEM budget."""
    Dp = _round_up(d_model, 128)
    Hp_full = _round_up(hidden, 128)
    tm = _round_up(min(tm_pref, _round_up(M, 16)), 16)

    if th_force is not None:
        cands = [_round_up(th_force, 128)]
    else:
        cands = [Hp_full] + [t for t in (4096, 2048, 1024, 512, 256, 128)
                             if t < Hp_full]

    def footprint(tm_, th_):
        return (2 * tm_ * Dp * xbytes          # pipelined x tiles
                + 2 * Dp * th_ * wbytes        # pipelined W1^T tiles
                + 2 * th_ * Dp * wbytes        # pipelined W2^T tiles
                + 2 * (th_ + Dp) * 4           # pipelined bias tiles
                + 2 * tm_ * Dp * obytes        # pipelined out tiles
                + tm_ * Dp * 4                 # f32 accumulator scratch
                + tm_ * th_ * 4 + tm_ * Dp * 4)  # f32 intermediates

    while True:
        for th in cands:
            if footprint(tm, th) <= budget_bytes:
                return tm, Dp, th, footprint(tm, th)
        if tm <= 16:
            th = cands[-1]
            return tm, Dp, th, footprint(tm, th)
        tm = max(16, _round_up(tm // 2, 16))


def feed_forward_block(x, w1, b1, w2, b2, *, tm=256,
                       compute_dtype=jnp.bfloat16, hidden_tile=None,
                       vmem_limit_bytes=None):
    """Fused Linear -> Dropout(eval) -> Linear.

    x : (batch, seq, d_model)
    w1: (hidden, d_model), b1: (hidden,)   -- PyTorch nn.Linear layout
    w2: (d_model, hidden), b2: (d_model,)
    """
    batch, seq, d_model = x.shape
    hidden = w1.shape[0]
    out_dtype = x.dtype
    M = batch * seq

    xbytes = jnp.dtype(x.dtype).itemsize
    cbytes = jnp.dtype(compute_dtype).itemsize
    obytes = jnp.dtype(out_dtype).itemsize

    tm, Dp, th, footprint = _choose_tiles(
        M, d_model, hidden, xbytes, cbytes, obytes,
        tm_pref=tm, th_force=hidden_tile)
    Mp = _round_up(M, tm)
    Hp = _round_up(hidden, th)
    Mi, Hj = Mp // tm, Hp // th

    # Activations stay in the input dtype (per-tile cast in-kernel avoids a
    # full extra HBM pass); weights are transposed + cast once in the wrapper.
    x2d = jnp.pad(x.reshape(M, d_model), ((0, Mp - M), (0, Dp - d_model)))
    w1_t = jnp.pad(w1.T.astype(compute_dtype),
                   ((0, Dp - d_model), (0, Hp - hidden)))       # (Dp, Hp)
    w2_t = jnp.pad(w2.T.astype(compute_dtype),
                   ((0, Hp - hidden), (0, Dp - d_model)))       # (Hp, Dp)
    b1_r = jnp.pad(b1.astype(jnp.float32), (0, Hp - hidden)).reshape(1, Hp)
    b2_r = jnp.pad(b2.astype(jnp.float32), (0, Dp - d_model)).reshape(1, Dp)

    if vmem_limit_bytes is None:
        # Headroom over the modeled footprint; v7x-safe ceiling (64 MiB phys).
        vmem_limit_bytes = int(min(max(32 << 20, footprint + (8 << 20)),
                                   48 << 20))

    weight_bytes = (w1_t.size + w2_t.size) * cbytes
    cost = pl.CostEstimate(
        flops=4 * Mp * Dp * Hp,
        transcendentals=0,
        bytes_accessed=int(x2d.size * xbytes
                           + weight_bytes * (1 if Hj == 1 else Mi)
                           + (b1_r.size + b2_r.size) * 4
                           + Mp * Dp * obytes))

    kernel = functools.partial(ffn_kernel, compute_dtype=compute_dtype, n_h=Hj)
    scratch = [pltpu.VMEM((tm, Dp), jnp.float32)] if Hj > 1 else []

    out2d = pl.pallas_call(
        kernel,
        out_shape=jax.ShapeDtypeStruct((Mp, Dp), out_dtype),
        grid_spec=pltpu.PrefetchScalarGridSpec(
            num_scalar_prefetch=0,
            grid=(Mi, Hj),
            in_specs=[
                pl.BlockSpec((tm, Dp), lambda i, j: (i, 0)),   # x row tile
                pl.BlockSpec((Dp, th), lambda i, j: (0, j)),   # W1^T hidden cols
                pl.BlockSpec((1, th), lambda i, j: (0, j)),    # b1 slice
                pl.BlockSpec((th, Dp), lambda i, j: (j, 0)),   # W2^T hidden rows
                pl.BlockSpec((1, Dp), lambda i, j: (0, 0)),    # b2
            ],
            out_specs=pl.BlockSpec((tm, Dp), lambda i, j: (i, 0)),
            scratch_shapes=scratch,
        ),
        compiler_params=pltpu.CompilerParams(
            dimension_semantics=("parallel", "arbitrary"),
            vmem_limit_bytes=vmem_limit_bytes),
        cost_estimate=cost,
    )(x2d, w1_t, b1_r, w2_t, b2_r)

    return out2d[:M, :d_model].reshape(batch, seq, d_model)


def init_params(key, d_model, hidden_dims, dtype=jnp.float32):
    """Deterministic PyTorch-style (Kaiming-uniform-ish) init for two Linears."""
    k1, k2, k3, k4 = jax.random.split(key, 4)
    bound1 = 1.0 / (d_model ** 0.5)
    bound2 = 1.0 / (hidden_dims ** 0.5)
    w1 = jax.random.uniform(k1, (hidden_dims, d_model), dtype, -bound1, bound1)
    b1 = jax.random.uniform(k2, (hidden_dims,), dtype, -bound1, bound1)
    w2 = jax.random.uniform(k3, (d_model, hidden_dims), dtype, -bound2, bound2)
    b2 = jax.random.uniform(k4, (d_model,), dtype, -bound2, bound2)
    return w1, b1, w2, b2


if __name__ == "__main__":
    key = jax.random.PRNGKey(0)

    # Case 1: small shapes, single hidden tile (resident-weight path).
    d_model, hidden_dims = 32, 64
    batch, seq = 2, 8
    kx, kp, kx2, kp2 = jax.random.split(key, 4)
    x = jax.random.normal(kx, (batch, seq, d_model), jnp.float32)
    w1, b1, w2, b2 = init_params(kp, d_model, hidden_dims)

    out_bf16 = jax.block_until_ready(feed_forward_block(x, w1, b1, w2, b2))
    out_f32 = jax.block_until_ready(
        feed_forward_block(x, w1, b1, w2, b2, compute_dtype=jnp.float32))

    ref = (x.reshape(-1, d_model) @ w1.T + b1) @ w2.T + b2
    ref = ref.reshape(batch, seq, d_model)

    assert out_bf16.shape == (batch, seq, d_model)
    assert out_f32.shape == (batch, seq, d_model)
    assert jnp.allclose(out_f32, ref, atol=1e-4, rtol=1e-4)
    # bf16 operands -> looser tolerance (mixed precision, not bit-matching f32).
    assert jnp.allclose(out_bf16, ref, atol=5e-2, rtol=5e-2)

    # Case 2: force the hidden-tiled (accumulator) path: Hj = 2.
    d_model2, hidden2 = 128, 256
    batch2, seq2 = 2, 24
    x2 = jax.random.normal(kx2, (batch2, seq2, d_model2), jnp.float32)
    w1b, b1b, w2b, b2b = init_params(kp2, d_model2, hidden2)

    out2 = jax.block_until_ready(
        feed_forward_block(x2, w1b, b1b, w2b, b2b,
                           compute_dtype=jnp.float32, hidden_tile=128))
    ref2 = (x2.reshape(-1, d_model2) @ w1b.T + b1b) @ w2b.T + b2b
    ref2 = ref2.reshape(batch2, seq2, d_model2)
    assert out2.shape == (batch2, seq2, d_model2)
    assert jnp.allclose(out2, ref2, atol=1e-4, rtol=1e-4)

    print("KERNEL_OK")
</pallas_src>

<mosaic_0001>
module attributes {stable_mosaic.version = 11 : i64} {
  func.func @ffn_kernel(%arg0: i32, %arg1: i32, %arg2: memref<16x128xf32, #tpu.memory_space<vmem>>, %arg3: memref<128x128xbf16, #tpu.memory_space<vmem>>, %arg4: memref<1x128xf32, #tpu.memory_space<vmem>>, %arg5: memref<128x128xbf16, #tpu.memory_space<vmem>>, %arg6: memref<1x128xf32, #tpu.memory_space<vmem>>, %arg7: memref<16x128xf32, #tpu.memory_space<vmem>>) attributes {dimension_semantics = [#tpu.dimension_semantics<parallel>, #tpu.dimension_semantics<arbitrary>], iteration_bounds = array<i64: 1, 1>, scalar_prefetch = 0 : i64, scratch_operands = 0 : i64, tpu.core_type = #tpu.core_type<tc>, window_params = [{transform_indices = @transform_0, window_bounds = array<i64: 16, 128>}, {transform_indices = @transform_1, window_bounds = array<i64: 128, 128>}, {transform_indices = @transform_2, window_bounds = array<i64: 1, 128>}, {transform_indices = @transform_3, window_bounds = array<i64: 128, 128>}, {pipeline_mode = #tpu.pipeline_mode<synchronous>, transform_indices = @transform_4, window_bounds = array<i64: 1, 128>}, {transform_indices = @transform_5, window_bounds = array<i64: 16, 128>}]} {
    %c0 = arith.constant 0 : index
    %c0_0 = arith.constant 0 : index
    %0 = vector.load %arg2[%c0, %c0_0] : memref<16x128xf32, #tpu.memory_space<vmem>>, vector<16x128xf32>
    %1 = arith.truncf %0 : vector<16x128xf32> to vector<16x128xbf16>
    %c0_1 = arith.constant 0 : index
    %c0_2 = arith.constant 0 : index
    %2 = vector.load %arg3[%c0_1, %c0_2] : memref<128x128xbf16, #tpu.memory_space<vmem>>, vector<128x128xbf16>
    %cst = arith.constant dense<0.000000e+00> : vector<16x128xf32>
    %3 = tpu.matmul %1, %2, %cst {dimension_numbers = #tpu.dot_dimension_numbers<[1], [0], [0], [1], [0, 0, 1, 1], [], []>} : vector<16x128xbf16>, vector<128x128xbf16>, vector<16x128xf32> -> vector<16x128xf32>
    %c0_3 = arith.constant 0 : index
    %c0_4 = arith.constant 0 : index
    %4 = vector.load %arg4[%c0_3, %c0_4] : memref<1x128xf32, #tpu.memory_space<vmem>>, vector<1x128xf32>
    %5 = vector.broadcast %4 : vector<1x128xf32> to vector<16x128xf32>
    %6 = arith.addf %3, %5 : vector<16x128xf32>
    %7 = arith.truncf %6 : vector<16x128xf32> to vector<16x128xbf16>
    %c0_5 = arith.constant 0 : index
    %c0_6 = arith.constant 0 : index
    %8 = vector.load %arg5[%c0_5, %c0_6] : memref<128x128xbf16, #tpu.memory_space<vmem>>, vector<128x128xbf16>
    %cst_7 = arith.constant dense<0.000000e+00> : vector<16x128xf32>
    %9 = tpu.matmul %7, %8, %cst_7 {dimension_numbers = #tpu.dot_dimension_numbers<[1], [0], [0], [1], [0, 0, 1, 1], [], []>} : vector<16x128xbf16>, vector<128x128xbf16>, vector<16x128xf32> -> vector<16x128xf32>
    %c0_8 = arith.constant 0 : index
    %c0_9 = arith.constant 0 : index
    %10 = vector.load %arg6[%c0_8, %c0_9] : memref<1x128xf32, #tpu.memory_space<vmem>>, vector<1x128xf32>
    %11 = vector.broadcast %10 : vector<1x128xf32> to vector<16x128xf32>
    %12 = arith.addf %9, %11 : vector<16x128xf32>
    %c0_10 = arith.constant 0 : index
    %c0_11 = arith.constant 0 : index
    %13 = vector.load %arg7[%c0_10, %c0_11] : memref<16x128xf32, #tpu.memory_space<vmem>>, vector<16x128xf32>
    tpu.vector_store %arg7[%c0_10, %c0_11], %12 {strides = array<i32>} : memref<16x128xf32, #tpu.memory_space<vmem>>, vector<16x128xf32>,
    return
  }
  func.func @transform_0(%arg0: i32, %arg1: i32) -> (i32, i32) {
    %c0_i32 = arith.constant 0 : i32
    %c0_i32_0 = arith.constant 0 : i32
    return %arg0, %c0_i32 : i32, i32
  }
  func.func @transform_1(%arg0: i32, %arg1: i32) -> (i32, i32) {
    %c0_i32 = arith.constant 0 : i32
    %c0_i32_0 = arith.constant 0 : i32
    return %c0_i32, %arg1 : i32, i32
  }
  func.func @transform_2(%arg0: i32, %arg1: i32) -> (i32, i32) {
    %c0_i32 = arith.constant 0 : i32
    %c0_i32_0 = arith.constant 0 : i32
    return %c0_i32, %arg1 : i32, i32
  }
  func.func @transform_3(%arg0: i32, %arg1: i32) -> (i32, i32) {
    %c0_i32 = arith.constant 0 : i32
    %c0_i32_0 = arith.constant 0 : i32
    return %arg1, %c0_i32 : i32, i32
  }
  func.func @transform_4(%arg0: i32, %arg1: i32) -> (i32, i32) {
    %c0_i32 = arith.constant 0 : i32
    %c0_i32_0 = arith.constant 0 : i32
    %c0_i32_1 = arith.constant 0 : i32
    return %c0_i32, %c0_i32_0 : i32, i32
  }
  func.func @transform_5(%arg0: i32, %arg1: i32) -> (i32, i32) {
    %c0_i32 = arith.constant 0 : i32
    %c0_i32_0 = arith.constant 0 : i32
    return %arg0, %c0_i32 : i32, i32
  }
}

</mosaic_0001>

<llo_original>
// kernel: tpu_custom_call.1
$region0: #{tpu_custom_call.1}
  #allocation0 [shape = 'u32[]', space=smem, size = 0x4, offset = 0x4, fixed_abs, tag = 'smem constant byte address 0x4 - core index']
  #allocation1 [shape = 'u32[144,128]{1,0:T(1,128)}', space=vmem, size = 0x12000, scoped, tag = 'internal scratch']
  %s0 = inlined_call_operand.hbm [shape: f32[16,128], index: 0, kind: input, shape index: {}]
  %s1 = inlined_call_operand.hbm [shape: bf16[128,128], index: 1, kind: input, shape index: {}]
  %s2 = inlined_call_operand.vmem [shape: f32[1,128], index: 2, kind: input, shape index: {}]
  %s3 = inlined_call_operand.hbm [shape: bf16[128,128], index: 3, kind: input, shape index: {}]
  %s4 = inlined_call_operand.vmem [shape: f32[1,128], index: 4, kind: input, shape index: {}]
  %s5 = inlined_call_operand.hbm [shape: f32[16,128], index: 5, kind: output, shape index: {}]
  %s6 = sld [smem:[#allocation0]]
  $region42: #{tpu_custom_call.1} parent=0
    _
  %s8 = ssub.s32 1, %s6
  %s9 = scalar_select 0, %s8, %s6
  $region1: #{tpu_custom_call.1} parent=0
    #allocation2 [shape = 'u8[8192]{0}', space=vmem, size = 0x2000, scoped, tag = 'input window, operand 0, single buffered']
    #allocation3 [shape = 's32[1]{0}', space=sflag, size = 0x4, scoped, tag = 'scoped memory for tpu_custom_call.1']
    #allocation4 [shape = 's32[1]{0}', space=sflag, size = 0x4, scoped, tag = 'scoped memory for tpu_custom_call.1']
    #allocation5 [shape = 'u8[32768]{0}', space=vmem, size = 0x8000, scoped, tag = 'input window, operand 1, single buffered']
    #allocation6 [shape = 's32[1]{0}', space=sflag, size = 0x4, scoped, tag = 'scoped memory for tpu_custom_call.1']
    #allocation7 [shape = 'u8[32768]{0}', space=vmem, size = 0x8000, scoped, tag = 'input window, operand 3, single buffered']
    #allocation8 [shape = 'u8[8192]{0}', space=vmem, size = 0x2000, scoped, tag = 'output window, operand 0, single buffered']
    %10 = vsyncpa [#allocation3], 0
    %11 = vsyncpa [#allocation6], 0
    %12 = vsyncpa [#allocation4], 0
    // Predicated region
    $region2: #{tpu_custom_call.1} parent=1 // pred_check
      _
    $region3: #{tpu_custom_call.1} parent=1 // pred_check_branch
      %14 = sbr.rel (0) target = $region5
    $region4: #{tpu_custom_call.1} parent=1 // pred_region
      %s16 = ssub.s32 256, 256
      %17 = vsyncadd [#allocation3], %s16
      %s18 = sshll.u32 [#allocation2], 4
      %s19 = int_to_ptr.vmem [resolvable:$true] %s18
      %24 = dma.hbm_to_vmem [thread:$0]  %s0, 256, %s19, [#allocation3], 128, 128, 8
    $region5: #{tpu_custom_call.1} parent=1 // pred_fallthru
      _
    // Predicated region
    $region6: #{tpu_custom_call.1} parent=1 // pred_check
      _
    $region7: #{tpu_custom_call.1} parent=1 // pred_check_branch
      %26 = sbr.rel (0) target = $region9
    $region8: #{tpu_custom_call.1} parent=1 // pred_region
      %s28 = ssub.s32 1024, 1024
      %29 = vsyncadd [#allocation6], %s28
      %s30 = sshll.u32 [#allocation5], 4
      %s31 = int_to_ptr.vmem [resolvable:$true] %s30
      %36 = dma.hbm_to_vmem [thread:$0]  %s1, 1024, %s31, [#allocation6], 64, 64, 4
    $region9: #{tpu_custom_call.1} parent=1 // pred_fallthru
      _
    // Predicated region
    $region10: #{tpu_custom_call.1} parent=1 // pred_check
      _
    $region11: #{tpu_custom_call.1} parent=1 // pred_check_branch
      %38 = sbr.rel (0) target = $region13
    $region12: #{tpu_custom_call.1} parent=1 // pred_region
      _
    $region13: #{tpu_custom_call.1} parent=1 // pred_fallthru
      _
    // Predicated region
    $region14: #{tpu_custom_call.1} parent=1 // pred_check
      _
    $region15: #{tpu_custom_call.1} parent=1 // pred_check_branch
      %40 = sbr.rel (0) target = $region17
    $region16: #{tpu_custom_call.1} parent=1 // pred_region
      %s42 = ssub.s32 1024, 1024
      %43 = vsyncadd [#allocation6], %s42
      %s44 = sshll.u32 [#allocation7], 4
      %s45 = int_to_ptr.vmem [resolvable:$true] %s44
      %50 = dma.hbm_to_vmem [thread:$0]  %s3, 1024, %s45, [#allocation6], 64, 64, 4
    $region17: #{tpu_custom_call.1} parent=1 // pred_fallthru
      _
    // Predicated region
    $region18: #{tpu_custom_call.1} parent=1 // pred_check
      _
    $region19: #{tpu_custom_call.1} parent=1 // pred_check_branch
      %52 = sbr.rel (0) target = $region21
    $region20: #{tpu_custom_call.1} parent=1 // pred_region
      _
    $region21: #{tpu_custom_call.1} parent=1 // pred_fallthru
      _
    // Predicated region
    $region22: #{tpu_custom_call.1} parent=1 // pred_check
      _
    $region23: #{tpu_custom_call.1} parent=1 // pred_check_branch
      %54 = sbr.rel (0) target = $region25
    $region24: #{tpu_custom_call.1} parent=1 // pred_region
      %55 = dma.done [#allocation3], 256
    $region25: #{tpu_custom_call.1} parent=1 // pred_fallthru
      _
    // Predicated region
    $region26: #{tpu_custom_call.1} parent=1 // pred_check
      _
    $region27: #{tpu_custom_call.1} parent=1 // pred_check_branch
      %57 = sbr.rel (0) target = $region29
    $region28: #{tpu_custom_call.1} parent=1 // pred_region
      %58 = dma.done [#allocation6], 1024
    $region29: #{tpu_custom_call.1} parent=1 // pred_fallthru
      _
    // Predicated region
    $region30: #{tpu_custom_call.1} parent=1 // pred_check
      _
    $region31: #{tpu_custom_call.1} parent=1 // pred_check_branch
      %60 = sbr.rel (0) target = $region33
    $region32: #{tpu_custom_call.1} parent=1 // pred_region
      %61 = dma.done [#allocation6], 1024
    $region33: #{tpu_custom_call.1} parent=1 // pred_fallthru
      _
    %v63 = vld [vmem:[#allocation2] sm:$0xff]
    %v64 = vld [vmem:[#allocation2 + $0x8] sm:$0xff]
    %v65 = vpack.c.bf16 %v64, %v63
    %v66 = vld [vmem:[#allocation5] sm:$0xf]
    %v67 = vld [vmem:[#allocation5 + $0x4] sm:$0xf]
    %v68 = vld [vmem:[#allocation5 + $0x8] sm:$0xf]
    %v69 = vld [vmem:[#allocation5 + $0xc] sm:$0xf]
    %v70 = vld [vmem:[#allocation5 + $0x10] sm:$0xf]
    %v71 = vld [vmem:[#allocation5 + $0x14] sm:$0xf]
    %v72 = vld [vmem:[#allocation5 + $0x18] sm:$0xf]
    %v73 = vld [vmem:[#allocation5 + $0x1c] sm:$0xf]
    %v74 = vld [vmem:[#allocation5 + $0x20] sm:$0xf]
    %v75 = vld [vmem:[#allocation5 + $0x24] sm:$0xf]
    %v76 = vld [vmem:[#allocation5 + $0x28] sm:$0xf]
    %v77 = vld [vmem:[#allocation5 + $0x2c] sm:$0xf]
    %v78 = vld [vmem:[#allocation5 + $0x30] sm:$0xf]
    %v79 = vld [vmem:[#allocation5 + $0x34] sm:$0xf]
    %v80 = vld [vmem:[#allocation5 + $0x38] sm:$0xf]
    %v81 = vld [vmem:[#allocation5 + $0x3c] sm:$0xf]
    %v82 = vld [vmem:[%s2] sm:$0x1]
    %v84 = vlaneseq
    %v85 = vshrl.u32 %v84, 7
    %v86 = vsub.s32 0, %v85
    %v87 = vrot.slane %v82, %v86
    %v105 = vunpack.c.l.b16 %v66
    %v106 = vunpack.c.l.b16 %v67
    %v107 = vunpack.c.l.b16 %v68
    %v108 = vunpack.c.l.b16 %v69
    %v109 = vunpack.c.l.b16 %v70
    %v110 = vunpack.c.l.b16 %v71
    %v111 = vunpack.c.l.b16 %v72
    %v112 = vunpack.c.l.b16 %v73
    %v113 = vunpack.c.l.b16 %v74
    %v114 = vunpack.c.l.b16 %v75
    %v115 = vunpack.c.l.b16 %v76
    %v116 = vunpack.c.l.b16 %v77
    %v117 = vunpack.c.l.b16 %v78
    %v118 = vunpack.c.l.b16 %v79
    %v119 = vunpack.c.l.b16 %v80
    %v120 = vunpack.c.l.b16 %v81
    %v121 = vpack.c.b16 %v106, %v105
    %v122 = vpack.c.b16 %v108, %v107
    %v123 = vpack.c.b16 %v110, %v109
    %v124 = vpack.c.b16 %v112, %v111
    %v125 = vpack.c.b16 %v114, %v113
    %v126 = vpack.c.b16 %v116, %v115
    %v127 = vpack.c.b16 %v118, %v117
    %v128 = vpack.c.b16 %v120, %v119
    %137 = vmatprep.subr.bf16.mxu0 0
    %138 = vmatpush1.bf16.msra.mxu0 %v121
    %139 = vmatprep.subr.bf16.mxu0 0
    %140 = vmatpush1.bf16.msra.mxu0 %v122
    %141 = vmatprep.subr.bf16.mxu0 0
    %142 = vmatpush1.bf16.msra.mxu0 %v123
    %143 = vmatprep.subr.bf16.mxu0 0
    %144 = vmatpush1.bf16.msra.mxu0 %v124
    %145 = vmatprep.subr.bf16.mxu0 0
    %146 = vmatpush1.bf16.msra.mxu0 %v125
    %147 = vmatprep.subr.bf16.mxu0 0
    %148 = vmatpush1.bf16.msra.mxu0 %v126
    %149 = vmatprep.subr.bf16.mxu0 0
    %150 = vmatpush1.bf16.msra.mxu0 %v127
    %151 = vmatprep.subr.bf16.mxu0 0
    %152 = vmatpush1.bf16.msra.mxu0 %v128
    %153 = vmatprep.subr.bf16.mxu0 0
    %154 = vmatpush1.bf16.msra.mxu0 0
    %155 = vmatprep.subr.bf16.mxu0 0
    %156 = vmatpush1.bf16.msra.mxu0 0
    %157 = vmatprep.subr.bf16.mxu0 0
    %158 = vmatpush1.bf16.msra.mxu0 0
    %159 = vmatprep.subr.bf16.mxu0 0
    %160 = vmatpush1.bf16.msra.mxu0 0
    %161 = vmatprep.subr.bf16.mxu0 0
    %162 = vmatpush1.bf16.msra.mxu0 0
    %163 = vmatprep.subr.bf16.mxu0 0
    %164 = vmatpush1.bf16.msra.mxu0 0
    %165 = vmatprep.subr.bf16.mxu0 0
    %166 = vmatpush1.bf16.msra.mxu0 0
    %167 = vmatprep.subr.bf16.mxu0 0
    %168 = vmatpush1.bf16.msra.mxu0 0
    %169 = vmatprep.mubr.bf16.mxu0 0
    %170 = vmatmul.mubr.bf16.gmra.mrb[0].mxu0 %v65
    %v171 = vpop.f32.mrb[0].mxu0
    %v172 = vadd.f32 %v87, %v171
    %v173 = vpop.f32.mrb[0].mxu0
    %v174 = vpop.f32.mrb[0].mxu0
    %v175 = vadd.f32 %v87, %v174
    %v176 = vpop.f32.mrb[0].mxu0
    %177 = vdwg.mxu0
    %v178 = vpack.c.bf16 %v175, %v172
    %v179 = vld [vmem:[#allocation7] sm:$0xf]
    %v180 = vld [vmem:[#allocation7 + $0x4] sm:$0xf]
    %v181 = vld [vmem:[#allocation7 + $0x8] sm:$0xf]
    %v182 = vld [vmem:[#allocation7 + $0xc] sm:$0xf]
    %v183 = vld [vmem:[#allocation7 + $0x10] sm:$0xf]
    %v184 = vld [vmem:[#allocation7 + $0x14] sm:$0xf]
    %v185 = vld [vmem:[#allocation7 + $0x18] sm:$0xf]
    %v186 = vld [vmem:[#allocation7 + $0x1c] sm:$0xf]
    %v187 = vld [vmem:[#allocation7 + $0x20] sm:$0xf]
    %v188 = vld [vmem:[#allocation7 + $0x24] sm:$0xf]
    %v189 = vld [vmem:[#allocation7 + $0x28] sm:$0xf]
    %v190 = vld [vmem:[#allocation7 + $0x2c] sm:$0xf]
    %v191 = vld [vmem:[#allocation7 + $0x30] sm:$0xf]
    %v192 = vld [vmem:[#allocation7 + $0x34] sm:$0xf]
    %v193 = vld [vmem:[#allocation7 + $0x38] sm:$0xf]
    %v194 = vld [vmem:[#allocation7 + $0x3c] sm:$0xf]
    %v195 = vld [vmem:[%s4] sm:$0x1]
    %v197 = vlaneseq
    %v198 = vshrl.u32 %v197, 7
    %v199 = vsub.s32 0, %v198
    %v200 = vrot.slane %v195, %v199
    %v218 = vunpack.c.l.b16 %v179
    %v219 = vunpack.c.l.b16 %v180
    %v220 = vunpack.c.l.b16 %v181
    %v221 = vunpack.c.l.b16 %v182
    %v222 = vunpack.c.l.b16 %v183
    %v223 = vunpack.c.l.b16 %v184
    %v224 = vunpack.c.l.b16 %v185
    %v225 = vunpack.c.l.b16 %v186
    %v226 = vunpack.c.l.b16 %v187
    %v227 = vunpack.c.l.b16 %v188
    %v228 = vunpack.c.l.b16 %v189
    %v229 = vunpack.c.l.b16 %v190
    %v230 = vunpack.c.l.b16 %v191
    %v231 = vunpack.c.l.b16 %v192
    %v232 = vunpack.c.l.b16 %v193
    %v233 = vunpack.c.l.b16 %v194
    %v234 = vpack.c.b16 %v219, %v218
    %v235 = vpack.c.b16 %v221, %v220
    %v236 = vpack.c.b16 %v223, %v222
    %v237 = vpack.c.b16 %v225, %v224
    %v238 = vpack.c.b16 %v227, %v226
    %v239 = vpack.c.b16 %v229, %v228
    %v240 = vpack.c.b16 %v231, %v230
    %v241 = vpack.c.b16 %v233, %v232
    %250 = vmatprep.subr.bf16.mxu0 0
    %251 = vmatpush1.bf16.msra.mxu0 %v234
    %252 = vmatprep.subr.bf16.mxu0 0
    %253 = vmatpush1.bf16.msra.mxu0 %v235
    %254 = vmatprep.subr.bf16.mxu0 0
    %255 = vmatpush1.bf16.msra.mxu0 %v236
    %256 = vmatprep.subr.bf16.mxu0 0
    %257 = vmatpush1.bf16.msra.mxu0 %v237
    %258 = vmatprep.subr.bf16.mxu0 0
    %259 = vmatpush1.bf16.msra.mxu0 %v238
    %260 = vmatprep.subr.bf16.mxu0 0
    %261 = vmatpush1.bf16.msra.mxu0 %v239
    %262 = vmatprep.subr.bf16.mxu0 0
    %263 = vmatpush1.bf16.msra.mxu0 %v240
    %264 = vmatprep.subr.bf16.mxu0 0
    %265 = vmatpush1.bf16.msra.mxu0 %v241
    %266 = vmatprep.subr.bf16.mxu0 0
    %267 = vmatpush1.bf16.msra.mxu0 0
    %268 = vmatprep.subr.bf16.mxu0 0
    %269 = vmatpush1.bf16.msra.mxu0 0
    %270 = vmatprep.subr.bf16.mxu0 0
    %271 = vmatpush1.bf16.msra.mxu0 0
    %272 = vmatprep.subr.bf16.mxu0 0
    %273 = vmatpush1.bf16.msra.mxu0 0
    %274 = vmatprep.subr.bf16.mxu0 0
    %275 = vmatpush1.bf16.msra.mxu0 0
    %276 = vmatprep.subr.bf16.mxu0 0
    %277 = vmatpush1.bf16.msra.mxu0 0
    %278 = vmatprep.subr.bf16.mxu0 0
    %279 = vmatpush1.bf16.msra.mxu0 0
    %280 = vmatprep.subr.bf16.mxu0 0
    %281 = vmatpush1.bf16.msra.mxu0 0
    %282 = vmatprep.mubr.bf16.mxu0 0
    %283 = vmatmul.mubr.bf16.gmra.mrb[0].mxu0 %v178
    %v284 = vpop.f32.mrb[0].mxu0
    %v285 = vadd.f32 %v200, %v284
    %v286 = vpop.f32.mrb[0].mxu0
    %v287 = vpop.f32.mrb[0].mxu0
    %v288 = vadd.f32 %v200, %v287
    %v289 = vpop.f32.mrb[0].mxu0
    %290 = vdwg.mxu0
    %291 = vst [vmem:[#allocation8] sm:$0xff] %v285
    %292 = vst [vmem:[#allocation8 + $0x8] sm:$0xff] %v288
    // Predicated region
    $region34: #{tpu_custom_call.1} parent=1 // pred_check
      _
    $region35: #{tpu_custom_call.1} parent=1 // pred_check_branch
      %294 = sbr.rel (0) target = $region37
    $region36: #{tpu_custom_call.1} parent=1 // pred_region
      %s296 = ssub.s32 256, 256
      %297 = vsyncadd [#allocation4], %s296
      %s298 = sshll.u32 [#allocation8], 4
      %s299 = int_to_ptr.vmem [resolvable:$true] %s298
      %304 = dma.vmem_to_hbm [thread:$0]  %s299, 256, %s5, [#allocation4], 128, 128, 8
    $region37: #{tpu_custom_call.1} parent=1 // pred_fallthru
      _
    // Predicated region
    $region38: #{tpu_custom_call.1} parent=1 // pred_check
      _
    $region39: #{tpu_custom_call.1} parent=1 // pred_check_branch
      %306 = sbr.rel (0) target = $region41
    $region40: #{tpu_custom_call.1} parent=1 // pred_region
      %307 = dma.done [#allocation4], 256
    $region41: #{tpu_custom_call.1} parent=1 // pred_fallthru
      _
    %308 = vsyncpa [#allocation3], 1
    %309 = vsyncpa [#allocation6], 1
    %310 = vsyncpa [#allocation4], 1

</llo_original>
